<compile_context>
chip_gen: v6e
topology: v6e:2x2x1
jax: 0.10.0
libtpu: 0.0.40
codegen_flags: <defaults>
</compile_context>

<pallas_src>
import jax
import jax.numpy as jnp
from jax.experimental import pallas as pl
from jax.experimental.pallas import tpu as pltpu

_VMEM_BUDGET = 48 * 1024 * 1024   # portable cap: < v7x 64 MiB physical, << v5e/v6e 128 MiB
_FULL_K_LIMIT = 8192              # beyond this, split the reduction onto a grid axis


# ------------------------------ Pallas kernels ------------------------------ #
def _linear_kernel_fullk(x_ref, w_ref, b_ref, o_ref):
    """One (tm, tn) output tile with the whole K dimension resident (2-D grid)."""
    acc = jnp.dot(
        x_ref[...].astype(jnp.bfloat16),        # fused f32->bf16 activation cast
        w_ref[...],
        preferred_element_type=jnp.float32,
    )
    o_ref[...] = (acc + b_ref[...].astype(jnp.float32)).astype(o_ref.dtype)


def _linear_kernel_ksplit(x_ref, w_ref, b_ref, o_ref, acc_ref):
    """One (tm, tn) output tile; grid axis 2 walks the K reduction (3-D grid)."""
    k = pl.program_id(2)

    @pl.when(k == 0)
    def _init():
        acc_ref[...] = jnp.zeros_like(acc_ref)

    acc_ref[...] += jnp.dot(
        x_ref[...].astype(jnp.bfloat16),        # fused f32->bf16 activation cast
        w_ref[...],
        preferred_element_type=jnp.float32,
    )

    @pl.when(k == pl.num_programs(2) - 1)
    def _finalize():
        # Bias add in f32 (v5e has no bf16 VALU), single down-cast on the store.
        o_ref[...] = (acc_ref[...] + b_ref[...].astype(jnp.float32)).astype(o_ref.dtype)


# ------------------------------ tiling helpers ------------------------------ #
def _pick_tile(dim, pref, mults):
    """Largest divisor of `dim` that is <= pref and a multiple of one of `mults`
    (tried in order, e.g. 256-aligned first for the 2x256^2 MXU)."""
    if dim <= pref:
        return dim
    for mult in mults:
        t = (pref // mult) * mult
        while t >= mult:
            if dim % t == 0:
                return t
            t -= mult
    return dim  # awkward dim: full-extent block (budget-checked by caller)


def pallas_linear(x2d, w, b, *, out_dtype=None, tm=1024, tn=2048, tk=512):
    """y = x2d @ w + b via a tiled Pallas TPU kernel.

    x2d: (M, K) activations (kept f32; cast to bf16 inside the kernel),
    w:   (K, N) bf16 weights, b: (1, N) f32 bias.  f32 MXU accumulation.
    """
    M, K = x2d.shape
    K2, N = w.shape
    assert K == K2 and b.shape == (1, N)
    out_dtype = jnp.dtype(out_dtype or x2d.dtype)

    xb, wb, bb, ob = (x2d.dtype.itemsize, w.dtype.itemsize,
                      b.dtype.itemsize, out_dtype.itemsize)

    # 256-aligned preferences for the 256-wide MXU (v6e/v7x); 128 fallback (v5e
    # / awkward dims); 8 fallback for M only.
    tm = _pick_tile(M, tm, (256, 128, 8))
    tn = _pick_tile(N, tn, (256, 128))
    tk = _pick_tile(K, tk, (256, 128))

    # v7x has 2 TensorCores sharding "parallel" grid axes: if both M and N
    # collapse to one block, split N so at least one parallel axis has >=2 blocks.
    if M // tm == 1 and N // tn == 1 and tn >= 512:
        half = _pick_tile(N, tn // 2, (256, 128))
        if N // half >= 2:
            tn = half

    # Full-K (2-D grid) when K is moderate and the tiles fit the VMEM budget:
    # drops the accumulator scratch and the per-K-step grid overhead.
    fullk_bytes = (2 * tm * K * xb + 2 * K * tn * wb
                   + 2 * tn * bb + 2 * tm * tn * ob)
    use_fullk = (K <= _FULL_K_LIMIT) and (fullk_bytes <= _VMEM_BUDGET)

    if not use_fullk:
        def _ksplit_bytes(tm_, tn_, tk_):
            return (2 * tm_ * tk_ * xb + 2 * tk_ * tn_ * wb
                    + 2 * tn_ * bb + tm_ * tn_ * 4 + 2 * tm_ * tn_ * ob)

        # Shrink tiles until the double-buffered footprint fits the portable cap.
        while _ksplit_bytes(tm, tn, tk) > _VMEM_BUDGET:
            new_tn = _pick_tile(N, tn // 2, (256, 128)) if tn > 256 else tn
            new_tm = _pick_tile(M, tm // 2, (256, 128, 8)) if tm > 256 else tm
            if new_tn < tn:
                tn = new_tn
            elif new_tm < tm:
                tm = new_tm
            else:
                # TODO(synk): cdiv grid with padded/masked edge tiles for awkward dims.
                break

    gm, gn = M // tm, N // tn

    # Honest HBM traffic: x re-read per N-block, w/bias re-read per M-block.
    bytes_accessed = (x2d.size * xb * gn + w.size * wb * gm
                      + b.size * bb * gm + M * N * ob)
    cost = pl.CostEstimate(flops=2 * M * N * K, transcendentals=0,
                           bytes_accessed=bytes_accessed)

    if use_fullk:
        return pl.pallas_call(
            _linear_kernel_fullk,
            out_shape=jax.ShapeDtypeStruct((M, N), out_dtype),
            grid=(gm, gn),
            in_specs=[
                pl.BlockSpec((tm, K), lambda i, j: (i, 0)),
                pl.BlockSpec((K, tn), lambda i, j: (0, j)),
                pl.BlockSpec((1, tn), lambda i, j: (0, j)),
            ],
            out_specs=pl.BlockSpec((tm, tn), lambda i, j: (i, j)),
            compiler_params=pltpu.CompilerParams(
                dimension_semantics=("parallel", "parallel"),
                vmem_limit_bytes=_VMEM_BUDGET,
            ),
            cost_estimate=cost,
        )(x2d, w, b)

    gk = K // tk
    return pl.pallas_call(
        _linear_kernel_ksplit,
        out_shape=jax.ShapeDtypeStruct((M, N), out_dtype),
        grid=(gm, gn, gk),
        in_specs=[
            pl.BlockSpec((tm, tk), lambda i, j, k: (i, k)),
            # NOTE: if profiling shows exposed DMA on the weight stream, add
            # pipeline_mode=pl.Buffered(3) here and re-check the VMEM budget.
            pl.BlockSpec((tk, tn), lambda i, j, k: (k, j)),
            pl.BlockSpec((1, tn), lambda i, j, k: (0, j)),  # bias: resident over k
        ],
        out_specs=pl.BlockSpec((tm, tn), lambda i, j, k: (i, j)),
        scratch_shapes=[pltpu.VMEM((tm, tn), jnp.float32)],
        compiler_params=pltpu.CompilerParams(
            dimension_semantics=("parallel", "parallel", "arbitrary"),
            vmem_limit_bytes=_VMEM_BUDGET,
        ),
        cost_estimate=cost,
    )(x2d, w, b)


# ------------------------- ModuleWrapper equivalent ------------------------- #
class PallasLinearModule:
    """Stand-in for torch.nn.Linear(hidden, hidden) backed by the Pallas kernel.

    f32 master weights; the bf16 MXU copy of W is cast ONCE at construction.
    Activations stay f32 end-to-end on the host side — the f32->bf16 cast is
    fused into the kernel.  Accumulation and bias add in f32.
    """

    def __init__(self, key, hidden, compute_dtype=jnp.bfloat16):
        kw, kb = jax.random.split(key)
        bound = 1.0 / (hidden ** 0.5)  # torch Linear default uniform init
        self.w_master = jax.random.uniform(kw, (hidden, hidden), jnp.float32,
                                           -bound, bound)
        self.b = jax.random.uniform(kb, (1, hidden), jnp.float32, -bound, bound)
        self.w = self.w_master.astype(compute_dtype)  # cast once, not per call

    def __call__(self, x):
        B, S, H = x.shape
        x2d = x.reshape(B * S, H)                      # no host-side dtype cast
        y2d = pallas_linear(x2d, self.w, self.b, out_dtype=x.dtype)
        return y2d.reshape(B, S, H)


class ModuleWrapper:
    """Faithful port of the PyTorch ModuleWrapper: stores the wrapped module
    under attribute `name` and forwards the call to it."""

    def __init__(self, module, name):
        self.name = name
        setattr(self, name, module)

    def __call__(self, x):
        return getattr(self, self.name)(x)


# ----------------------------------- main ----------------------------------- #
if __name__ == "__main__":
    key = jax.random.PRNGKey(0)
    k_in, k_mod = jax.random.split(key)

    # Small demo shapes; hidden is a multiple of 128 so the output last dim is
    # lane-dense (unmasked stores, full-width MXU passes).
    batch, seq, hidden = 2, 8, 128
    x = jax.random.normal(k_in, (batch, seq, hidden), dtype=jnp.float32)

    inner = PallasLinearModule(k_mod, hidden)
    wrapped = ModuleWrapper(inner, name="linear")

    y = wrapped(x)
    jax.block_until_ready(y)

    # Reference: bf16 operands on the MXU, f32 accumulation, f32 bias add.
    x2d_bf = x.reshape(-1, hidden).astype(jnp.bfloat16)
    y_ref = jnp.dot(x2d_bf, inner.w, preferred_element_type=jnp.float32) + inner.b
    y_ref = y_ref.reshape(batch, seq, hidden).astype(x.dtype)
    assert jnp.allclose(y, y_ref, atol=1e-2, rtol=1e-2), "mismatch vs reference"

    print("KERNEL_OK")
</pallas_src>

<mosaic_0001>
module attributes {stable_mosaic.version = 11 : i64} {
  func.func @_linear_kernel_fullk(%arg0: i32, %arg1: i32, %arg2: memref<16x128xf32, #tpu.memory_space<vmem>>, %arg3: memref<128x128xbf16, #tpu.memory_space<vmem>>, %arg4: memref<1x128xf32, #tpu.memory_space<vmem>>, %arg5: memref<16x128xf32, #tpu.memory_space<vmem>>) attributes {dimension_semantics = [#tpu.dimension_semantics<parallel>, #tpu.dimension_semantics<parallel>], iteration_bounds = array<i64: 1, 1>, scalar_prefetch = 0 : i64, scratch_operands = 0 : i64, tpu.core_type = #tpu.core_type<tc>, window_params = [{transform_indices = @transform_0, window_bounds = array<i64: 16, 128>}, {transform_indices = @transform_1, window_bounds = array<i64: 128, 128>}, {transform_indices = @transform_2, window_bounds = array<i64: 1, 128>}, {transform_indices = @transform_3, window_bounds = array<i64: 16, 128>}]} {
    %c0 = arith.constant 0 : index
    %c0_0 = arith.constant 0 : index
    %0 = vector.load %arg2[%c0, %c0_0] : memref<16x128xf32, #tpu.memory_space<vmem>>, vector<16x128xf32>
    %1 = arith.truncf %0 : vector<16x128xf32> to vector<16x128xbf16>
    %c0_1 = arith.constant 0 : index
    %c0_2 = arith.constant 0 : index
    %2 = vector.load %arg3[%c0_1, %c0_2] : memref<128x128xbf16, #tpu.memory_space<vmem>>, vector<128x128xbf16>
    %cst = arith.constant dense<0.000000e+00> : vector<16x128xf32>
    %3 = tpu.matmul %1, %2, %cst {dimension_numbers = #tpu.dot_dimension_numbers<[1], [0], [0], [1], [0, 0, 1, 1], [], []>} : vector<16x128xbf16>, vector<128x128xbf16>, vector<16x128xf32> -> vector<16x128xf32>
    %c0_3 = arith.constant 0 : index
    %c0_4 = arith.constant 0 : index
    %4 = vector.load %arg4[%c0_3, %c0_4] : memref<1x128xf32, #tpu.memory_space<vmem>>, vector<1x128xf32>
    %5 = vector.broadcast %4 : vector<1x128xf32> to vector<16x128xf32>
    %6 = arith.addf %3, %5 : vector<16x128xf32>
    %c0_5 = arith.constant 0 : index
    %c0_6 = arith.constant 0 : index
    %7 = vector.load %arg5[%c0_5, %c0_6] : memref<16x128xf32, #tpu.memory_space<vmem>>, vector<16x128xf32>
    tpu.vector_store %arg5[%c0_5, %c0_6], %6 {strides = array<i32>} : memref<16x128xf32, #tpu.memory_space<vmem>>, vector<16x128xf32>,
    return
  }
  func.func @transform_0(%arg0: i32, %arg1: i32) -> (i32, i32) {
    %c0_i32 = arith.constant 0 : i32
    %c0_i32_0 = arith.constant 0 : i32
    return %arg0, %c0_i32 : i32, i32
  }
  func.func @transform_1(%arg0: i32, %arg1: i32) -> (i32, i32) {
    %c0_i32 = arith.constant 0 : i32
    %c0_i32_0 = arith.constant 0 : i32
    return %c0_i32, %arg1 : i32, i32
  }
  func.func @transform_2(%arg0: i32, %arg1: i32) -> (i32, i32) {
    %c0_i32 = arith.constant 0 : i32
    %c0_i32_0 = arith.constant 0 : i32
    return %c0_i32, %arg1 : i32, i32
  }
  func.func @transform_3(%arg0: i32, %arg1: i32) -> (i32, i32) {
    %c0_i32 = arith.constant 0 : i32
    return %arg0, %arg1 : i32, i32
  }
}

</mosaic_0001>

<llo_original>
// kernel: tpu_custom_call.1
$region0: #{tpu_custom_call.1}
  #allocation0 [shape = 'u32[]', space=smem, size = 0x4, offset = 0x4, fixed_abs, tag = 'smem constant byte address 0x4 - core index']
  #allocation1 [shape = 'u32[144,128]{1,0:T(1,128)}', space=vmem, size = 0x12000, scoped, tag = 'internal scratch']
  %s0 = inlined_call_operand.hbm [shape: f32[16,128], index: 0, kind: input, shape index: {}]
  %s1 = inlined_call_operand.hbm [shape: bf16[128,128], index: 1, kind: input, shape index: {}]
  %s2 = inlined_call_operand.vmem [shape: f32[1,128], index: 2, kind: input, shape index: {}]
  %s3 = inlined_call_operand.hbm [shape: f32[16,128], index: 3, kind: output, shape index: {}]
  %s4 = sld [smem:[#allocation0]]
  $region30: #{tpu_custom_call.1} parent=0
    _
  %s6 = ssub.s32 1, %s4
  %s7 = scalar_select 0, %s6, %s4
  $region1: #{tpu_custom_call.1} parent=0
    #allocation2 [shape = 'u8[8192]{0}', space=vmem, size = 0x2000, scoped, tag = 'input window, operand 0, single buffered']
    #allocation3 [shape = 's32[1]{0}', space=sflag, size = 0x4, scoped, tag = 'scoped memory for tpu_custom_call.1']
    #allocation4 [shape = 's32[1]{0}', space=sflag, size = 0x4, scoped, tag = 'scoped memory for tpu_custom_call.1']
    #allocation5 [shape = 'u8[32768]{0}', space=vmem, size = 0x8000, scoped, tag = 'input window, operand 1, single buffered']
    #allocation6 [shape = 's32[1]{0}', space=sflag, size = 0x4, scoped, tag = 'scoped memory for tpu_custom_call.1']
    #allocation7 [shape = 'u8[8192]{0}', space=vmem, size = 0x2000, scoped, tag = 'output window, operand 0, single buffered']
    %8 = vsyncpa [#allocation3], 0
    %9 = vsyncpa [#allocation6], 0
    %10 = vsyncpa [#allocation4], 0
    // Predicated region
    $region2: #{tpu_custom_call.1} parent=1 // pred_check
      _
    $region3: #{tpu_custom_call.1} parent=1 // pred_check_branch
      %12 = sbr.rel (0) target = $region5
    $region4: #{tpu_custom_call.1} parent=1 // pred_region
      %s14 = ssub.s32 256, 256
      %15 = vsyncadd [#allocation3], %s14
      %s16 = sshll.u32 [#allocation2], 4
      %s17 = int_to_ptr.vmem [resolvable:$true] %s16
      %22 = dma.hbm_to_vmem [thread:$0]  %s0, 256, %s17, [#allocation3], 128, 128, 8
    $region5: #{tpu_custom_call.1} parent=1 // pred_fallthru
      _
    // Predicated region
    $region6: #{tpu_custom_call.1} parent=1 // pred_check
      _
    $region7: #{tpu_custom_call.1} parent=1 // pred_check_branch
      %24 = sbr.rel (0) target = $region9
    $region8: #{tpu_custom_call.1} parent=1 // pred_region
      %s26 = ssub.s32 1024, 1024
      %27 = vsyncadd [#allocation6], %s26
      %s28 = sshll.u32 [#allocation5], 4
      %s29 = int_to_ptr.vmem [resolvable:$true] %s28
      %34 = dma.hbm_to_vmem [thread:$0]  %s1, 1024, %s29, [#allocation6], 64, 64, 4
    $region9: #{tpu_custom_call.1} parent=1 // pred_fallthru
      _
    // Predicated region
    $region10: #{tpu_custom_call.1} parent=1 // pred_check
      _
    $region11: #{tpu_custom_call.1} parent=1 // pred_check_branch
      %36 = sbr.rel (0) target = $region13
    $region12: #{tpu_custom_call.1} parent=1 // pred_region
      _
    $region13: #{tpu_custom_call.1} parent=1 // pred_fallthru
      _
    // Predicated region
    $region14: #{tpu_custom_call.1} parent=1 // pred_check
      _
    $region15: #{tpu_custom_call.1} parent=1 // pred_check_branch
      %38 = sbr.rel (0) target = $region17
    $region16: #{tpu_custom_call.1} parent=1 // pred_region
      %39 = dma.done [#allocation3], 256
    $region17: #{tpu_custom_call.1} parent=1 // pred_fallthru
      _
    // Predicated region
    $region18: #{tpu_custom_call.1} parent=1 // pred_check
      _
    $region19: #{tpu_custom_call.1} parent=1 // pred_check_branch
      %41 = sbr.rel (0) target = $region21
    $region20: #{tpu_custom_call.1} parent=1 // pred_region
      %42 = dma.done [#allocation6], 1024
    $region21: #{tpu_custom_call.1} parent=1 // pred_fallthru
      _
    %v44 = vld [vmem:[#allocation2] sm:$0xff]
    %v45 = vld [vmem:[#allocation2 + $0x8] sm:$0xff]
    %v46 = vpack.c.bf16 %v45, %v44
    %v47 = vld [vmem:[#allocation5] sm:$0xf]
    %v48 = vld [vmem:[#allocation5 + $0x4] sm:$0xf]
    %v49 = vld [vmem:[#allocation5 + $0x8] sm:$0xf]
    %v50 = vld [vmem:[#allocation5 + $0xc] sm:$0xf]
    %v51 = vld [vmem:[#allocation5 + $0x10] sm:$0xf]
    %v52 = vld [vmem:[#allocation5 + $0x14] sm:$0xf]
    %v53 = vld [vmem:[#allocation5 + $0x18] sm:$0xf]
    %v54 = vld [vmem:[#allocation5 + $0x1c] sm:$0xf]
    %v55 = vld [vmem:[#allocation5 + $0x20] sm:$0xf]
    %v56 = vld [vmem:[#allocation5 + $0x24] sm:$0xf]
    %v57 = vld [vmem:[#allocation5 + $0x28] sm:$0xf]
    %v58 = vld [vmem:[#allocation5 + $0x2c] sm:$0xf]
    %v59 = vld [vmem:[#allocation5 + $0x30] sm:$0xf]
    %v60 = vld [vmem:[#allocation5 + $0x34] sm:$0xf]
    %v61 = vld [vmem:[#allocation5 + $0x38] sm:$0xf]
    %v62 = vld [vmem:[#allocation5 + $0x3c] sm:$0xf]
    %v63 = vld [vmem:[%s2] sm:$0x1]
    %v65 = vlaneseq
    %v66 = vshrl.u32 %v65, 7
    %v67 = vsub.s32 0, %v66
    %v68 = vrot.slane %v63, %v67
    %v86 = vunpack.c.l.b16 %v47
    %v87 = vunpack.c.l.b16 %v48
    %v88 = vunpack.c.l.b16 %v49
    %v89 = vunpack.c.l.b16 %v50
    %v90 = vunpack.c.l.b16 %v51
    %v91 = vunpack.c.l.b16 %v52
    %v92 = vunpack.c.l.b16 %v53
    %v93 = vunpack.c.l.b16 %v54
    %v94 = vunpack.c.l.b16 %v55
    %v95 = vunpack.c.l.b16 %v56
    %v96 = vunpack.c.l.b16 %v57
    %v97 = vunpack.c.l.b16 %v58
    %v98 = vunpack.c.l.b16 %v59
    %v99 = vunpack.c.l.b16 %v60
    %v100 = vunpack.c.l.b16 %v61
    %v101 = vunpack.c.l.b16 %v62
    %v102 = vpack.c.b16 %v87, %v86
    %v103 = vpack.c.b16 %v89, %v88
    %v104 = vpack.c.b16 %v91, %v90
    %v105 = vpack.c.b16 %v93, %v92
    %v106 = vpack.c.b16 %v95, %v94
    %v107 = vpack.c.b16 %v97, %v96
    %v108 = vpack.c.b16 %v99, %v98
    %v109 = vpack.c.b16 %v101, %v100
    %118 = vmatprep.subr.bf16.mxu0 0
    %119 = vmatpush1.bf16.msra.mxu0 %v109
    %120 = vmatprep.subr.bf16.mxu0 0
    %121 = vmatpush1.bf16.msra.mxu0 %v108
    %122 = vmatprep.subr.bf16.mxu0 0
    %123 = vmatpush1.bf16.msra.mxu0 %v107
    %124 = vmatprep.subr.bf16.mxu0 0
    %125 = vmatpush1.bf16.msra.mxu0 %v106
    %126 = vmatprep.subr.bf16.mxu0 0
    %127 = vmatpush1.bf16.msra.mxu0 %v105
    %128 = vmatprep.subr.bf16.mxu0 0
    %129 = vmatpush1.bf16.msra.mxu0 %v104
    %130 = vmatprep.subr.bf16.mxu0 0
    %131 = vmatpush1.bf16.msra.mxu0 %v103
    %132 = vmatprep.subr.bf16.mxu0 0
    %133 = vmatpush1.bf16.msra.mxu0 %v102
    %134 = vmatprep.subr.bf16.mxu0 0
    %135 = vmatpush2.bf16.msra.mxu0 0
    %136 = vmatprep.subr.bf16.mxu0 0
    %137 = vmatpush2.bf16.msra.mxu0 0
    %138 = vmatprep.subr.bf16.mxu0 0
    %139 = vmatpush2.bf16.msra.mxu0 0
    %140 = vmatprep.subr.bf16.mxu0 0
    %141 = vmatpush2.bf16.msra.mxu0 0
    %142 = vmatprep.subr.bf16.mxu0 0
    %143 = vmatpush2.bf16.msra.mxu0 0
    %144 = vmatprep.subr.bf16.mxu0 0
    %145 = vmatpush2.bf16.msra.mxu0 0
    %146 = vmatprep.subr.bf16.mxu0 0
    %147 = vmatpush2.bf16.msra.mxu0 0
    %148 = vmatprep.subr.bf16.mxu0 0
    %149 = vmatpush2.bf16.msra.mxu0 0
    %150 = vmatprep.mubr.bf16.mxu0 0
    %151 = vmatmul.mubr.bf16.gmra.mxu0 %v46
    %v152 = vpop.f32.mrf.mxu0
    %v153 = vadd.f32 %v68, %v152
    %v154 = vpop.f32.mrf.mxu0
    %v155 = vpop.f32.mrf.mxu0
    %v156 = vadd.f32 %v68, %v155
    %v157 = vpop.f32.mrf.mxu0
    %158 = vdwg.mxu0
    %159 = vst [vmem:[#allocation7] sm:$0xff] %v153
    %160 = vst [vmem:[#allocation7 + $0x8] sm:$0xff] %v156
    // Predicated region
    $region22: #{tpu_custom_call.1} parent=1 // pred_check
      _
    $region23: #{tpu_custom_call.1} parent=1 // pred_check_branch
      %162 = sbr.rel (0) target = $region25
    $region24: #{tpu_custom_call.1} parent=1 // pred_region
      %s164 = ssub.s32 256, 256
      %165 = vsyncadd [#allocation4], %s164
      %s166 = sshll.u32 [#allocation7], 4
      %s167 = int_to_ptr.vmem [resolvable:$true] %s166
      %172 = dma.vmem_to_hbm [thread:$0]  %s167, 256, %s3, [#allocation4], 128, 128, 8
    $region25: #{tpu_custom_call.1} parent=1 // pred_fallthru
      _
    // Predicated region
    $region26: #{tpu_custom_call.1} parent=1 // pred_check
      _
    $region27: #{tpu_custom_call.1} parent=1 // pred_check_branch
      %174 = sbr.rel (0) target = $region29
    $region28: #{tpu_custom_call.1} parent=1 // pred_region
      %175 = dma.done [#allocation4], 256
    $region29: #{tpu_custom_call.1} parent=1 // pred_fallthru
      _
    %176 = vsyncpa [#allocation3], 1
    %177 = vsyncpa [#allocation6], 1
    %178 = vsyncpa [#allocation4], 1

</llo_original>
